<compile_context>
chip_gen: v7x
topology: tpu7x:2x2x1
jax: 0.10.0
libtpu: 0.0.40
codegen_flags: <defaults>
</compile_context>

<pallas_src>
import functools

import jax
import jax.numpy as jnp
from jax import lax
from jax.experimental import pallas as pl
from jax.experimental.pallas import tpu as pltpu


def _round_up(x, m):
    return ((x + m - 1) // m) * m


def _conv1d_kernel(x_ref, w_ref, b_ref, o_ref, *, k, tn, halo, n_l):
    # x_ref: (1, Cin, Lp + halo)  whole padded per-batch row (VMEM-resident
    #                             across the length-tile grid axis)
    # w_ref: (k, Cout, Cin)       per-tap weight slabs (VMEM-resident)
    # b_ref: (Cout, 1)            bias column (VMEM-resident)
    # o_ref: (1, Cout, tn)        one lane-dense output tile, written in NCW
    cout = o_ref.shape[1]
    if n_l == 1:
        base = 0                                        # fully static slice
    else:
        base = pl.multiple_of(pl.program_id(1) * tn, 128)   # 128-aligned start
    # One aligned window load (tn + halo lanes); per-tap shifts are static
    # lane slices of the loaded value (no extra HBM traffic, no masked loads).
    win = x_ref[:, :, pl.ds(base, tn + halo)][0]        # (Cin, tn + halo)
    acc = jnp.zeros((cout, tn), jnp.float32)
    for t in range(k):                                  # k is small: static unroll
        acc = acc + jnp.dot(w_ref[t], win[:, t:t + tn],
                            preferred_element_type=jnp.float32)
    o_ref[0] = (acc + b_ref[...]).astype(o_ref.dtype)


def convmodel_forward(x, weight, bias, *, col_tile=4096,
                      vmem_budget_bytes=40 * 1024 * 1024):
    """Conv1d with padding = k//2 (same-length output), NCW layout."""
    N, cin, L = x.shape
    cout, cin_w, k = weight.shape
    assert cin == cin_w and k % 2 == 1
    pad = k // 2
    itemsize = jnp.dtype(x.dtype).itemsize

    halo = _round_up(k - 1, 128)          # 128-aligned halo for the tap shifts

    # ---- length-tile selection: lane-dense, grown toward the VMEM budget ----
    # col_tile is rounded to a multiple of 128 so a user-supplied value can
    # never produce a lane-misaligned BlockSpec.
    tn = _round_up(min(max(col_tile, 128), _round_up(L, 128)), 128)

    def _footprint(t):
        lp = _round_up(L, t)
        x_blk = cin * (lp + halo) * itemsize          # resident padded row
        w_blk = k * cout * cin * itemsize             # resident weight
        b_blk = max(cout, 8) * 128 * itemsize         # bias (padded tile)
        o_blk = cout * t * itemsize                   # output tile
        return 2 * (x_blk + w_blk + b_blk + o_blk)    # double-buffered pipeline

    while tn > 128 and _footprint(tn) > vmem_budget_bytes:
        tn -= 128
    if _footprint(tn) > vmem_budget_bytes:
        # TODO(synk): haloed length tiling of the *input* for very long rows;
        # currently the whole padded per-batch row must fit in VMEM.
        raise ValueError("per-batch input row does not fit the VMEM budget")

    Lp = _round_up(L, tn)                 # padded output length (multiple of tn)
    n_l = Lp // tn
    Lpad = Lp + halo                      # padded input length (>= L + k - 1)

    # ---- the only wrapper-side data movement: zero-pad the length axis ------
    x_pad = jnp.pad(x, ((0, 0), (0, 0), (pad, Lpad - L - pad)))   # (N, Cin, Lpad)
    w_taps = jnp.transpose(weight, (2, 0, 1))                     # (k, Cout, Cin)
    b2 = bias.reshape(cout, 1)                                    # (Cout, 1)

    kernel = functools.partial(_conv1d_kernel, k=k, tn=tn, halo=halo, n_l=n_l)

    cost = pl.CostEstimate(
        flops=2 * N * cout * cin * k * Lp,
        transcendentals=0,
        bytes_accessed=itemsize * (N * cin * Lpad + k * cout * cin + cout
                                   + N * cout * Lp),
    )

    out = pl.pallas_call(
        kernel,
        out_shape=jax.ShapeDtypeStruct((N, cout, Lp), x.dtype),
        grid_spec=pl.GridSpec(
            grid=(N, n_l),
            in_specs=[
                # whole padded row per batch; constant along the length axis,
                # so it is DMA'd once per batch and stays VMEM-resident.
                pl.BlockSpec((1, cin, Lpad), lambda n, j: (n, 0, 0)),
                # weight / bias: VMEM-resident (constant index_map).
                pl.BlockSpec((k, cout, cin), lambda n, j: (0, 0, 0)),
                pl.BlockSpec((cout, 1), lambda n, j: (0, 0)),
            ],
            out_specs=pl.BlockSpec((1, cout, tn), lambda n, j: (n, 0, j)),
        ),
        compiler_params=pltpu.CompilerParams(
            dimension_semantics=("parallel", "parallel"),
            vmem_limit_bytes=int(min(max(_footprint(tn) + (8 << 20), 16 << 20),
                                     48 << 20)),
        ),
        cost_estimate=cost,
    )(x_pad, w_taps, b2)

    return out if Lp == L else out[:, :, :L]


if __name__ == "__main__":
    # Small shapes consistent with Conv1d(ninp, out, k): batch=2, ninp=8,
    # out=8, L=128, k=3.
    N, ninp, out_ch, L, k = 2, 8, 8, 128, 3

    key = jax.random.PRNGKey(0)
    kx, kw, kb = jax.random.split(key, 3)

    x = jax.random.normal(kx, (N, ninp, L), dtype=jnp.float32)

    # Deterministic parameter init mirroring the module:
    #   weight ~ U(-0.1, 0.1)                         (init_weights)
    #   bias   ~ U(-1/sqrt(fan_in), 1/sqrt(fan_in))   (PyTorch Conv1d default)
    initrange = 0.1
    weight = jax.random.uniform(kw, (out_ch, ninp, k), jnp.float32,
                                minval=-initrange, maxval=initrange)
    bound = 1.0 / (ninp * k) ** 0.5
    bias = jax.random.uniform(kb, (out_ch,), jnp.float32,
                              minval=-bound, maxval=bound)

    y = convmodel_forward(x, weight, bias)
    y = jax.block_until_ready(y)

    # Reference: XLA conv (cross-correlation, same as PyTorch Conv1d).
    y_ref = lax.conv_general_dilated(
        x, weight, window_strides=(1,), padding=[(k // 2, k // 2)],
        dimension_numbers=("NCH", "OIH", "NCH"),
    ) + bias.reshape(1, out_ch, 1)

    assert y.shape == (N, out_ch, L)
    assert jnp.allclose(y, y_ref, atol=1e-5, rtol=1e-5)
    print("KERNEL_OK")
</pallas_src>

<mosaic_0001>
module attributes {stable_mosaic.version = 11 : i64} {
  func.func @_conv1d_kernel(%arg0: i32, %arg1: i32, %arg2: memref<1x8x256xf32, #tpu.memory_space<vmem>>, %arg3: memref<3x8x8xf32, #tpu.memory_space<vmem>>, %arg4: memref<8x1xf32, #tpu.memory_space<vmem>>, %arg5: memref<1x8x128xf32, #tpu.memory_space<vmem>>) attributes {dimension_semantics = [#tpu.dimension_semantics<parallel>, #tpu.dimension_semantics<parallel>], iteration_bounds = array<i64: 2, 1>, scalar_prefetch = 0 : i64, scratch_operands = 0 : i64, tpu.core_type = #tpu.core_type<tc>, window_params = [{transform_indices = @transform_0, window_bounds = array<i64: 1, 8, 256>}, {pipeline_mode = #tpu.pipeline_mode<synchronous>, transform_indices = @transform_1, window_bounds = array<i64: 3, 8, 8>}, {pipeline_mode = #tpu.pipeline_mode<synchronous>, transform_indices = @transform_2, window_bounds = array<i64: 8, 1>}, {transform_indices = @transform_3, window_bounds = array<i64: 1, 8, 128>}]} {
    %c0 = arith.constant 0 : index
    %c0_0 = arith.constant 0 : index
    %c0_1 = arith.constant 0 : index
    %0 = vector.load %arg2[%c0, %c0_0, %c0_1] : memref<1x8x256xf32, #tpu.memory_space<vmem>>, vector<1x8x256xf32>
    %1 = vector.shape_cast %0 : vector<1x8x256xf32> to vector<8x256xf32>
    %cst = arith.constant 0.000000e+00 : f32
    %2 = vector.broadcast %cst : f32 to vector<8x128xf32>
    %c0_2 = arith.constant 0 : index
    %c0_3 = arith.constant 0 : index
    %c0_4 = arith.constant 0 : index
    %3 = vector.load %arg3[%c0_2, %c0_3, %c0_4] : memref<3x8x8xf32, #tpu.memory_space<vmem>>, vector<1x8x8xf32>
    %4 = vector.shape_cast %3 : vector<1x8x8xf32> to vector<8x8xf32>
    %5 = vector.extract_strided_slice %1 {offsets = [0, 0], sizes = [8, 128], strides = [1, 1]} : vector<8x256xf32> to vector<8x128xf32>
    %cst_5 = arith.constant dense<0.000000e+00> : vector<8x128xf32>
    %6 = tpu.matmul %4, %5, %cst_5 {dimension_numbers = #tpu.dot_dimension_numbers<[1], [0], [0], [1], [0, 0, 1, 1], [], []>} : vector<8x8xf32>, vector<8x128xf32>, vector<8x128xf32> -> vector<8x128xf32>
    %7 = arith.addf %2, %6 : vector<8x128xf32>
    %c1 = arith.constant 1 : index
    %c0_6 = arith.constant 0 : index
    %c0_7 = arith.constant 0 : index
    %8 = vector.load %arg3[%c1, %c0_6, %c0_7] : memref<3x8x8xf32, #tpu.memory_space<vmem>>, vector<1x8x8xf32>
    %9 = vector.shape_cast %8 : vector<1x8x8xf32> to vector<8x8xf32>
    %10 = vector.extract_strided_slice %1 {offsets = [0, 1], sizes = [8, 128], strides = [1, 1]} : vector<8x256xf32> to vector<8x128xf32>
    %cst_8 = arith.constant dense<0.000000e+00> : vector<8x128xf32>
    %11 = tpu.matmul %9, %10, %cst_8 {dimension_numbers = #tpu.dot_dimension_numbers<[1], [0], [0], [1], [0, 0, 1, 1], [], []>} : vector<8x8xf32>, vector<8x128xf32>, vector<8x128xf32> -> vector<8x128xf32>
    %12 = arith.addf %7, %11 : vector<8x128xf32>
    %c2 = arith.constant 2 : index
    %c0_9 = arith.constant 0 : index
    %c0_10 = arith.constant 0 : index
    %13 = vector.load %arg3[%c2, %c0_9, %c0_10] : memref<3x8x8xf32, #tpu.memory_space<vmem>>, vector<1x8x8xf32>
    %14 = vector.shape_cast %13 : vector<1x8x8xf32> to vector<8x8xf32>
    %15 = vector.extract_strided_slice %1 {offsets = [0, 2], sizes = [8, 128], strides = [1, 1]} : vector<8x256xf32> to vector<8x128xf32>
    %cst_11 = arith.constant dense<0.000000e+00> : vector<8x128xf32>
    %16 = tpu.matmul %14, %15, %cst_11 {dimension_numbers = #tpu.dot_dimension_numbers<[1], [0], [0], [1], [0, 0, 1, 1], [], []>} : vector<8x8xf32>, vector<8x128xf32>, vector<8x128xf32> -> vector<8x128xf32>
    %17 = arith.addf %12, %16 : vector<8x128xf32>
    %c0_12 = arith.constant 0 : index
    %c0_13 = arith.constant 0 : index
    %18 = vector.load %arg4[%c0_12, %c0_13] : memref<8x1xf32, #tpu.memory_space<vmem>>, vector<8x1xf32>
    %19 = vector.broadcast %18 : vector<8x1xf32> to vector<8x128xf32>
    %20 = arith.addf %17, %19 : vector<8x128xf32>
    %c0_14 = arith.constant 0 : index
    %c0_15 = arith.constant 0 : index
    %c0_16 = arith.constant 0 : index
    %21 = vector.load %arg5[%c0_14, %c0_15, %c0_16] : memref<1x8x128xf32, #tpu.memory_space<vmem>>, vector<1x8x128xf32>
    %22 = vector.shape_cast %21 : vector<1x8x128xf32> to vector<8x128xf32>
    %23 = vector.shape_cast %20 : vector<8x128xf32> to vector<1x8x128xf32>
    tpu.vector_store %arg5[%c0_14, %c0_15, %c0_16], %23 {strides = array<i32>} : memref<1x8x128xf32, #tpu.memory_space<vmem>>, vector<1x8x128xf32>,
    return
  }
  func.func @transform_0(%arg0: i32, %arg1: i32) -> (i32, i32, i32) {
    %c0_i32 = arith.constant 0 : i32
    %c0_i32_0 = arith.constant 0 : i32
    %c0_i32_1 = arith.constant 0 : i32
    return %arg0, %c0_i32, %c0_i32_0 : i32, i32, i32
  }
  func.func @transform_1(%arg0: i32, %arg1: i32) -> (i32, i32, i32) {
    %c0_i32 = arith.constant 0 : i32
    %c0_i32_0 = arith.constant 0 : i32
    %c0_i32_1 = arith.constant 0 : i32
    %c0_i32_2 = arith.constant 0 : i32
    return %c0_i32, %c0_i32_0, %c0_i32_1 : i32, i32, i32
  }
  func.func @transform_2(%arg0: i32, %arg1: i32) -> (i32, i32) {
    %c0_i32 = arith.constant 0 : i32
    %c0_i32_0 = arith.constant 0 : i32
    %c0_i32_1 = arith.constant 0 : i32
    return %c0_i32, %c0_i32_0 : i32, i32
  }
  func.func @transform_3(%arg0: i32, %arg1: i32) -> (i32, i32, i32) {
    %c0_i32 = arith.constant 0 : i32
    %c0_i32_0 = arith.constant 0 : i32
    return %arg0, %c0_i32, %arg1 : i32, i32, i32
  }
}

</mosaic_0001>

<llo_original>
// kernel: tpu_custom_call.1
$region0: #{tpu_custom_call.1}
  #allocation0 [shape = 'u32[]', space=smem, size = 0x4, offset = 0x4, fixed_abs, tag = 'smem constant byte address 0x4 - core index']
  #allocation1 [shape = 'u32[144,128]{1,0:T(1,128)}', space=vmem, size = 0x12000, scoped, tag = 'internal scratch']
  %s0 = inlined_call_operand.hbm [shape: f32[2,8,256], index: 0, kind: input, shape index: {}]
  %s1 = inlined_call_operand.hbm [shape: f32[3,8,8], index: 1, kind: input, shape index: {}]
  %s2 = inlined_call_operand.vmem [shape: f32[8,1], index: 2, kind: input, shape index: {}]
  %s3 = inlined_call_operand.hbm [shape: f32[2,8,128], index: 3, kind: output, shape index: {}]
  %s4 = sld [smem:[#allocation0]]
  $region53: #{tpu_custom_call.1} parent=0
    _
  %s6 = ssub.s32 1, %s4
  %s7 = scalar_select 0, %s6, %s4
  $region1: #{tpu_custom_call.1} parent=0
    #allocation2 [shape = 'u8[16384]{0}', space=vmem, size = 0x4000, scoped, tag = 'input window, operand 0']
    #allocation3 [shape = 's32[2]{0}', space=sflag, size = 0x8, scoped, tag = 'scoped memory for tpu_custom_call.1']
    #allocation4 [shape = 's32[2]{0}', space=sflag, size = 0x8, scoped, tag = 'scoped memory for tpu_custom_call.1']
    #allocation5 [shape = 'u8[12288]{0}', space=vmem, size = 0x3000, scoped, tag = 'input window, operand 1, single buffered']
    #allocation6 [shape = 's32[1]{0}', space=sflag, size = 0x4, scoped, tag = 'scoped memory for tpu_custom_call.1']
    #allocation7 [shape = 'u8[8192]{0}', space=vmem, size = 0x2000, scoped, tag = 'output window, operand 0']
    %8 = vsyncpa [#allocation3], 0
    %s9 = scalar_lea.sflag [#allocation3], 1
    %10 = vsyncpa %s9, 0
    %11 = vsyncpa [#allocation6], 0
    %12 = vsyncpa [#allocation4], 0
    %s13 = scalar_lea.sflag [#allocation4], 1
    %14 = vsyncpa %s13, 0
    loop: start=0, step=1, limit=4
    $region2: #{tpu_custom_call.1} parent=1 // loop_pre_header
      _
    $region3: #{tpu_custom_call.1} parent=1 // loop_header
      %s16 = sphi 0, %s20
      %p17 = scmp.ge.s32.totalorder %s16, 4
      %s23 = sphi 0, %s35
      %s24 = sphi 0, %s31
      %s25 = sphi 0, %s23
      %s26 = sphi 0, %s24
      %s27 = sphi 0, %s25
      %s28 = sphi 0, %s26
      %s38 = sphi 0, %s40
      %s41 = sphi 0, %s38
      %s42 = sphi 0, %s41
      %s58 = sphi 0, %s42
      %s62 = sphi 0, %s62
      %s64 = sphi 0, %s62
      %s65 = sphi 0, %s64
      %s79 = sphi 0, %s65
      %s83 = sphi 0, %s83
      %s85 = sphi 0, %s83
      %s86 = sphi 0, %s85
      %s100 = sphi 0, %s86
      %s108 = sphi 0, %s110
      %s111 = sphi 0, %s108
      %s112 = sphi 0, %s111
      %s128 = sphi 0, %s112
    $region4: #{tpu_custom_call.1} parent=1 // loop_header_branch
      %19 = sbr.rel (%p17) target = $region8
    $region5: #{tpu_custom_call.1} parent=1 // loop_body
      %s21 = ssub.s32 %s16, 1
      %s22 = ssub.s32 %s16, 2
      %s29 = sadd.s32 1, %s24
      %p30 = scmp.ge.s32.totalorder %s29, 1
      %s31 = scalar_select %p30, 0, %s29
      %s32 = sadd.s32 1, %s23
      %s33 = scalar_select %p30, %s32, %s23
      %p34 = scmp.ge.s32.totalorder %s33, 2
      %s35 = scalar_select %p34, 0, %s33
      %s36 = ssub.s32 %s23, %s35
      %p37 = scmp.eq.s32.totalorder %s36, 0
      %s39 = sadd.s32 %s38, 1
      %s40 = scalar_select %p37, %s38, %s39
      %p43 = pneg %p37
      %p44 = scmp.eq.s32.totalorder %s16, 1
      %p45 = por %p43, %p44
      %p46 = scmp.ne.s32.totalorder %s38, %s41
      %p47 = scmp.eq.s32.totalorder %s16, 0
      %p48 = por %p46, %p47
      %p49 = scmp.ne.s32.totalorder %s38, %s41
      %p50 = scmp.eq.s32.totalorder %s21, 1
      %p51 = por %p49, %p50
      %p52 = scmp.ne.s32.totalorder %s41, %s42
      %p53 = scmp.eq.s32.totalorder %s21, 0
      %p54 = por %p52, %p53
      %p55 = scmp.ne.s32.totalorder %s41, %s42
      %p56 = scmp.eq.s32.totalorder %s22, 1
      %p57 = por %p55, %p56
      %p59 = scmp.ne.s32.totalorder %s42, %s58
      %p60 = scmp.eq.s32.totalorder %s22, 0
      %p61 = por %p59, %p60
      %s63 = sadd.s32 %s62, 1
      %p66 = scmp.eq.s32.totalorder %s16, 1
      %p67 = scmp.ne.s32.totalorder %s62, %s64
      %p68 = scmp.eq.s32.totalorder %s16, 0
      %p69 = por %p67, %p68
      %p70 = scmp.ne.s32.totalorder %s62, %s64
      %p71 = scmp.eq.s32.totalorder %s21, 1
      %p72 = por %p70, %p71
      %p73 = scmp.ne.s32.totalorder %s64, %s65
      %p74 = scmp.eq.s32.totalorder %s21, 0
      %p75 = por %p73, %p74
      %p76 = scmp.ne.s32.totalorder %s64, %s65
      %p77 = scmp.eq.s32.totalorder %s22, 1
      %p78 = por %p76, %p77
      %p80 = scmp.ne.s32.totalorder %s65, %s79
      %p81 = scmp.eq.s32.totalorder %s22, 0
      %p82 = por %p80, %p81
      %s84 = sadd.s32 %s83, 1
      %p87 = scmp.eq.s32.totalorder %s16, 1
      %p88 = scmp.ne.s32.totalorder %s83, %s85
      %p89 = scmp.eq.s32.totalorder %s16, 0
      %p90 = por %p88, %p89
      %p91 = scmp.ne.s32.totalorder %s83, %s85
      %p92 = scmp.eq.s32.totalorder %s21, 1
      %p93 = por %p91, %p92
      %p94 = scmp.ne.s32.totalorder %s85, %s86
      %p95 = scmp.eq.s32.totalorder %s21, 0
      %p96 = por %p94, %p95
      %p97 = scmp.ne.s32.totalorder %s85, %s86
      %p98 = scmp.eq.s32.totalorder %s22, 1
      %p99 = por %p97, %p98
      %p101 = scmp.ne.s32.totalorder %s86, %s100
      %p102 = scmp.eq.s32.totalorder %s22, 0
      %p103 = por %p101, %p102
      %s104 = ssub.s32 %s23, %s35
      %s105 = ssub.s32 %s24, %s31
      %s106 = sor.u32 %s104, %s105
      %p107 = scmp.eq.s32.totalorder %s106, 0
      %s109 = sadd.s32 %s108, 1
      %s110 = scalar_select %p107, %s108, %s109
      %p113 = pneg %p107
      %p114 = scmp.eq.s32.totalorder %s16, 1
      %p115 = por %p113, %p114
      %p116 = scmp.ne.s32.totalorder %s108, %s111
      %p117 = scmp.eq.s32.totalorder %s16, 0
      %p118 = por %p116, %p117
      %p119 = scmp.ne.s32.totalorder %s108, %s111
      %p120 = scmp.eq.s32.totalorder %s21, 1
      %p121 = por %p119, %p120
      %p122 = scmp.ne.s32.totalorder %s111, %s112
      %p123 = scmp.eq.s32.totalorder %s21, 0
      %p124 = por %p122, %p123
      %p125 = scmp.ne.s32.totalorder %s111, %s112
      %p126 = scmp.eq.s32.totalorder %s22, 1
      %p127 = por %p125, %p126
      %p129 = scmp.ne.s32.totalorder %s112, %s128
      %p130 = scmp.eq.s32.totalorder %s22, 0
      %p131 = por %p129, %p130
      %p132 = scmp.le.s32.totalorder 1, %s16
      %p133 = scmp.lt.s32.totalorder %s16, 3
      %p134 = pnand %p132, %p133
      %p135 = pneg %p134
      // Predicated region
      $region9: #{tpu_custom_call.1} parent=5 // pred_check
        _
      $region10: #{tpu_custom_call.1} parent=5 // pred_check_branch
        %137 = sbr.rel (%p134) target = $region12
      $region11: #{tpu_custom_call.1} parent=5 // pred_region
        %s138 = ssub.s32 %s16, 1
        // Predicated region
        $region13: #{tpu_custom_call.1} parent=11 // pred_check
          %p139 = pneg %p75
        $region14: #{tpu_custom_call.1} parent=11 // pred_check_branch
          %141 = sbr.rel (%p139) target = $region16
        $region15: #{tpu_custom_call.1} parent=11 // pred_region
          %s143 = ssub.s32 384, 384
          %144 = vsyncadd [#allocation6], %s143
          %s145 = sshll.u32 [#allocation5], 4
          %s146 = int_to_ptr.vmem [resolvable:$true] %s145
          %151 = dma.hbm_to_vmem [thread:$0]  %s1, 384, %s146, [#allocation6], 128, 128, 8
        $region16: #{tpu_custom_call.1} parent=11 // pred_fallthru
          _
        // Predicated region
        $region17: #{tpu_custom_call.1} parent=11 // pred_check
          %p152 = pneg %p96
        $region18: #{tpu_custom_call.1} parent=11 // pred_check_branch
          %154 = sbr.rel (%p152) target = $region20
        $region19: #{tpu_custom_call.1} parent=11 // pred_region
          _
        $region20: #{tpu_custom_call.1} parent=11 // pred_fallthru
          _
      $region12: #{tpu_custom_call.1} parent=5 // pred_fallthru
        _
      %p155 = scmp.lt.s32.totalorder %s16, 2
      // Predicated region
      $region21: #{tpu_custom_call.1} parent=5 // pred_check
        %p156 = pneg %p155
      $region22: #{tpu_custom_call.1} parent=5 // pred_check_branch
        %158 = sbr.rel (%p156) target = $region24
      $region23: #{tpu_custom_call.1} parent=5 // pred_region
        // Predicated region
        $region25: #{tpu_custom_call.1} parent=23 // pred_check
          %p159 = pneg %p48
        $region26: #{tpu_custom_call.1} parent=23 // pred_check_branch
          %161 = sbr.rel (%p159) target = $region28
        $region27: #{tpu_custom_call.1} parent=23 // pred_region
          %s162 = sand.u32 %s38, 1
          %s163 = scalar_lea.sflag [#allocation3], %s162
          %s164 = sand.u32 %s38, 1
          %s165 = smul.addr %s164, 16
          %s166 = scalar_lea.vmem [#allocation2], %s165
          %s168 = ssub.s32 256, 256
          %169 = vsyncadd %s163, %s168
          %s170 = smul.addr %s23, 2
          %s171 = smul.addr %s170, 128
          %s172 = scalar_lea.hbm %s0, %s171
          %s174 = sshll.u32 %s166, 4
          %s175 = int_to_ptr.vmem [resolvable:$true] %s174
          %177 = dma.hbm_to_vmem [thread:$0]  %s172, 256, %s175, %s163
        $region28: #{tpu_custom_call.1} parent=23 // pred_fallthru
          _
      $region24: #{tpu_custom_call.1} parent=5 // pred_fallthru
        _
      %p178 = scmp.le.s32.totalorder 1, %s16
      %p179 = scmp.lt.s32.totalorder %s16, 3
      %p180 = pnand %p178, %p179
      %p181 = pneg %p180
      // Predicated region
      $region29: #{tpu_custom_call.1} parent=5 // pred_check
        _
      $region30: #{tpu_custom_call.1} parent=5 // pred_check_branch
        %183 = sbr.rel (%p180) target = $region32
      $region31: #{tpu_custom_call.1} parent=5 // pred_region
        %s184 = ssub.s32 %s16, 1
        %s185 = sand.u32 %s41, 1
        %s186 = scalar_lea.sflag [#allocation3], %s185
        %s187 = sand.u32 %s41, 1
        %s188 = smul.addr %s187, 16
        %s189 = scalar_lea.vmem [#allocation2], %s188
        // Predicated region
        $region33: #{tpu_custom_call.1} parent=31 // pred_check
          %p190 = pneg %p54
        $region34: #{tpu_custom_call.1} parent=31 // pred_check_branch
          %192 = sbr.rel (%p190) target = $region36
        $region35: #{tpu_custom_call.1} parent=31 // pred_region
          %193 = dma.done %s186, 256
        $region36: #{tpu_custom_call.1} parent=31 // pred_fallthru
          _
        // Predicated region
        $region37: #{tpu_custom_call.1} parent=31 // pred_check
          %p194 = pneg %p75
        $region38: #{tpu_custom_call.1} parent=31 // pred_check_branch
          %196 = sbr.rel (%p194) target = $region40
        $region39: #{tpu_custom_call.1} parent=31 // pred_region
          %197 = dma.done [#allocation6], 384
        $region40: #{tpu_custom_call.1} parent=31 // pred_fallthru
          _
        %s198 = sand.u32 %s41, 1
        %s199 = scalar_lea.sflag [#allocation3], %s198
        %s200 = sand.u32 %s41, 1
        %s201 = smul.addr %s200, 16
        %s202 = scalar_lea.vmem [#allocation2], %s201
        %p203 = pneg %p54
        %p204 = pneg %p51
        %p205 = pneg %p75
        %p206 = pneg %p72
        %p207 = pneg %p96
        %p208 = pneg %p93
        %p209 = pneg %p124
        %p210 = pneg %p121
        %s211 = sand.u32 %s111, 1
        %s212 = scalar_lea.sflag [#allocation4], %s211
        %s213 = sand.u32 %s111, 1
        %s214 = smul.addr %s213, 8
        %s215 = scalar_lea.vmem [#allocation7], %s214
        %v216 = vld [vmem:[%s189] sm:$0xff]
        %v217 = vld [vmem:[%s189 + $0x8] sm:$0xff]
        %v218 = vld [vmem:[#allocation5] sm:$0xff]
        %s219 = scalar_lea.vmem [#allocation5], 8
        %v220 = vld [vmem:[%s219] sm:$0xff]
        %223 = vrot.lane.b32.xlu0 %v216, 127
        %v224 = vpop.permute.xlu0 %223
        %225 = vrot.lane.b32.xlu0 %v217, 127
        %v226 = vpop.permute.xlu0 %225
        %vm227 = vcmask 1039360
        %v228 = vsel %vm227, %v224, %v226
        %vm230 = vcmask 64512
        %v232 = vsel %vm230, %v220, 0
        %234 = vmatprep.subr.mxu0 0.0
        %235 = vmatpush1.msra.mxu0 %v228
        %236 = vmatprep.subr.mxu0 0.0
        %237 = vmatpush1.msra.mxu0 0.0
        %238 = vmatprep.subr.mxu0 0.0
        %239 = vmatpush1.msra.mxu0 0.0
        %240 = vmatprep.subr.mxu0 0.0
        %241 = vmatpush1.msra.mxu0 0.0
        %242 = vmatprep.subr.mxu0 0.0
        %243 = vmatpush1.msra.mxu0 0.0
        %244 = vmatprep.subr.mxu0 0.0
        %245 = vmatpush1.msra.mxu0 0.0
        %246 = vmatprep.subr.mxu0 0.0
        %247 = vmatpush1.msra.mxu0 0.0
        %248 = vmatprep.subr.mxu0 0.0
        %249 = vmatpush1.msra.mxu0 0.0
        %250 = vmatprep.subr.mxu0 0.0
        %251 = vmatpush1.msra.mxu0 0.0
        %252 = vmatprep.subr.mxu0 0.0
        %253 = vmatpush1.msra.mxu0 0.0
        %254 = vmatprep.subr.mxu0 0.0
        %255 = vmatpush1.msra.mxu0 0.0
        %256 = vmatprep.subr.mxu0 0.0
        %257 = vmatpush1.msra.mxu0 0.0
        %258 = vmatprep.subr.mxu0 0.0
        %259 = vmatpush1.msra.mxu0 0.0
        %260 = vmatprep.subr.mxu0 0.0
        %261 = vmatpush1.msra.mxu0 0.0
        %262 = vmatprep.subr.mxu0 0.0
        %263 = vmatpush1.msra.mxu0 0.0
        %264 = vmatprep.subr.mxu0 0.0
        %265 = vmatpush1.msra.mxu0 0.0
        %266 = vmatprep.subr.mxu0 0.0
        %267 = vmatpush1.msra.mxu0 0.0
        %268 = vmatprep.subr.mxu0 0.0
        %269 = vmatpush1.msra.mxu0 0.0
        %270 = vmatprep.subr.mxu0 0.0
        %271 = vmatpush1.msra.mxu0 0.0
        %272 = vmatprep.subr.mxu0 0.0
        %273 = vmatpush1.msra.mxu0 0.0
        %274 = vmatprep.subr.mxu0 0.0
        %275 = vmatpush1.msra.mxu0 0.0
        %276 = vmatprep.subr.mxu0 0.0
        %277 = vmatpush1.msra.mxu0 0.0
        %278 = vmatprep.subr.mxu0 0.0
        %279 = vmatpush1.msra.mxu0 0.0
        %280 = vmatprep.subr.mxu0 0.0
        %281 = vmatpush1.msra.mxu0 0.0
        %282 = vmatprep.subr.mxu0 0.0
        %283 = vmatpush1.msra.mxu0 0.0
        %284 = vmatprep.subr.mxu0 0.0
        %285 = vmatpush1.msra.mxu0 0.0
        %286 = vmatprep.subr.mxu0 0.0
        %287 = vmatpush1.msra.mxu0 0.0
        %288 = vmatprep.subr.mxu0 0.0
        %289 = vmatpush1.msra.mxu0 0.0
        %290 = vmatprep.subr.mxu0 0.0
        %291 = vmatpush1.msra.mxu0 0.0
        %292 = vmatprep.subr.mxu0 0.0
        %293 = vmatpush1.msra.mxu0 0.0
        %294 = vmatprep.subr.mxu0 0.0
        %295 = vmatpush1.msra.mxu0 0.0
        %296 = vmatprep.subr.mxu0 0.0
        %297 = vmatpush1.msra.mxu0 0.0
        %298 = vmatprep.mubr.f32.mxu0 0.0
        %299 = vmatmul.mubr.f32.gmra.mrb[0].mxu0 %v232
        %v300 = vpop.f32.mrb[0].mxu0
        %v301 = vadd.f32 0.0, %v300
        %v302 = vpop.f32.mrb[0].mxu0
        %303 = vdwg.mxu0
        %v305 = vsel %vm230, %v218, 0
        %307 = vmatprep.subr.mxu0 0.0
        %308 = vmatpush1.msra.mxu0 %v216
        %309 = vmatprep.subr.mxu0 0.0
        %310 = vmatpush1.msra.mxu0 0.0
        %311 = vmatprep.subr.mxu0 0.0
        %312 = vmatpush1.msra.mxu0 0.0
        %313 = vmatprep.subr.mxu0 0.0
        %314 = vmatpush1.msra.mxu0 0.0
        %315 = vmatprep.subr.mxu0 0.0
        %316 = vmatpush1.msra.mxu0 0.0
        %317 = vmatprep.subr.mxu0 0.0
        %318 = vmatpush1.msra.mxu0 0.0
        %319 = vmatprep.subr.mxu0 0.0
        %320 = vmatpush1.msra.mxu0 0.0
        %321 = vmatprep.subr.mxu0 0.0
        %322 = vmatpush1.msra.mxu0 0.0
        %323 = vmatprep.subr.mxu0 0.0
        %324 = vmatpush1.msra.mxu0 0.0
        %325 = vmatprep.subr.mxu0 0.0
        %326 = vmatpush1.msra.mxu0 0.0
        %327 = vmatprep.subr.mxu0 0.0
        %328 = vmatpush1.msra.mxu0 0.0
        %329 = vmatprep.subr.mxu0 0.0
        %330 = vmatpush1.msra.mxu0 0.0
        %331 = vmatprep.subr.mxu0 0.0
        %332 = vmatpush1.msra.mxu0 0.0
        %333 = vmatprep.subr.mxu0 0.0
        %334 = vmatpush1.msra.mxu0 0.0
        %335 = vmatprep.subr.mxu0 0.0
        %336 = vmatpush1.msra.mxu0 0.0
        %337 = vmatprep.subr.mxu0 0.0
        %338 = vmatpush1.msra.mxu0 0.0
        %339 = vmatprep.subr.mxu0 0.0
        %340 = vmatpush1.msra.mxu0 0.0
        %341 = vmatprep.subr.mxu0 0.0
        %342 = vmatpush1.msra.mxu0 0.0
        %343 = vmatprep.subr.mxu0 0.0
        %344 = vmatpush1.msra.mxu0 0.0
        %345 = vmatprep.subr.mxu0 0.0
        %346 = vmatpush1.msra.mxu0 0.0
        %347 = vmatprep.subr.mxu0 0.0
        %348 = vmatpush1.msra.mxu0 0.0
        %349 = vmatprep.subr.mxu0 0.0
        %350 = vmatpush1.msra.mxu0 0.0
        %351 = vmatprep.subr.mxu0 0.0
        %352 = vmatpush1.msra.mxu0 0.0
        %353 = vmatprep.subr.mxu0 0.0
        %354 = vmatpush1.msra.mxu0 0.0
        %355 = vmatprep.subr.mxu0 0.0
        %356 = vmatpush1.msra.mxu0 0.0
        %357 = vmatprep.subr.mxu0 0.0
        %358 = vmatpush1.msra.mxu0 0.0
        %359 = vmatprep.subr.mxu0 0.0
        %360 = vmatpush1.msra.mxu0 0.0
        %361 = vmatprep.subr.mxu0 0.0
        %362 = vmatpush1.msra.mxu0 0.0
        %363 = vmatprep.subr.mxu0 0.0
        %364 = vmatpush1.msra.mxu0 0.0
        %365 = vmatprep.subr.mxu0 0.0
        %366 = vmatpush1.msra.mxu0 0.0
        %367 = vmatprep.subr.mxu0 0.0
        %368 = vmatpush1.msra.mxu0 0.0
        %369 = vmatprep.subr.mxu0 0.0
        %370 = vmatpush1.msra.mxu0 0.0
        %371 = vmatprep.mubr.f32.mxu0 0.0
        %372 = vmatmul.mubr.f32.gmra.mrb[0].mxu0 %v305
        %v373 = vpop.f32.mrb[0].mxu0
        %v374 = vadd.f32 %v301, %v373
        %v375 = vpop.f32.mrb[0].mxu0
        %376 = vdwg.mxu0
        %s377 = scalar_lea.vmem [#allocation5], 16
        %v378 = vld [vmem:[%s377] sm:$0xff]
        %379 = vrot.lane.b32.xlu0 %v216, 126
        %v380 = vpop.permute.xlu0 %379
        %381 = vrot.lane.b32.xlu0 %v217, 126
        %v382 = vpop.permute.xlu0 %381
        %vm383 = vcmask 1031168
        %v384 = vsel %vm383, %v380, %v382
        %v387 = vsel %vm230, %v378, 0
        %389 = vmatprep.subr.mxu0 0.0
        %390 = vmatpush1.msra.mxu0 %v384
        %391 = vmatprep.subr.mxu0 0.0
        %392 = vmatpush1.msra.mxu0 0.0
        %393 = vmatprep.subr.mxu0 0.0
        %394 = vmatpush1.msra.mxu0 0.0
        %395 = vmatprep.subr.mxu0 0.0
        %396 = vmatpush1.msra.mxu0 0.0
        %397 = vmatprep.subr.mxu0 0.0
        %398 = vmatpush1.msra.mxu0 0.0
        %399 = vmatprep.subr.mxu0 0.0
        %400 = vmatpush1.msra.mxu0 0.0
        %401 = vmatprep.subr.mxu0 0.0
        %402 = vmatpush1.msra.mxu0 0.0
        %403 = vmatprep.subr.mxu0 0.0
        %404 = vmatpush1.msra.mxu0 0.0
        %405 = vmatprep.subr.mxu0 0.0
        %406 = vmatpush1.msra.mxu0 0.0
        %407 = vmatprep.subr.mxu0 0.0
        %408 = vmatpush1.msra.mxu0 0.0
        %409 = vmatprep.subr.mxu0 0.0
        %410 = vmatpush1.msra.mxu0 0.0
        %411 = vmatprep.subr.mxu0 0.0
        %412 = vmatpush1.msra.mxu0 0.0
        %413 = vmatprep.subr.mxu0 0.0
        %414 = vmatpush1.msra.mxu0 0.0
        %415 = vmatprep.subr.mxu0 0.0
        %416 = vmatpush1.msra.mxu0 0.0
        %417 = vmatprep.subr.mxu0 0.0
        %418 = vmatpush1.msra.mxu0 0.0
        %419 = vmatprep.subr.mxu0 0.0
        %420 = vmatpush1.msra.mxu0 0.0
        %421 = vmatprep.subr.mxu0 0.0
        %422 = vmatpush1.msra.mxu0 0.0
        %423 = vmatprep.subr.mxu0 0.0
        %424 = vmatpush1.msra.mxu0 0.0
        %425 = vmatprep.subr.mxu0 0.0
        %426 = vmatpush1.msra.mxu0 0.0
        %427 = vmatprep.subr.mxu0 0.0
        %428 = vmatpush1.msra.mxu0 0.0
        %429 = vmatprep.subr.mxu0 0.0
        %430 = vmatpush1.msra.mxu0 0.0
        %431 = vmatprep.subr.mxu0 0.0
        %432 = vmatpush1.msra.mxu0 0.0
        %433 = vmatprep.subr.mxu0 0.0
        %434 = vmatpush1.msra.mxu0 0.0
        %435 = vmatprep.subr.mxu0 0.0
        %436 = vmatpush1.msra.mxu0 0.0
        %437 = vmatprep.subr.mxu0 0.0
        %438 = vmatpush1.msra.mxu0 0.0
        %439 = vmatprep.subr.mxu0 0.0
        %440 = vmatpush1.msra.mxu0 0.0
        %441 = vmatprep.subr.mxu0 0.0
        %442 = vmatpush1.msra.mxu0 0.0
        %443 = vmatprep.subr.mxu0 0.0
        %444 = vmatpush1.msra.mxu0 0.0
        %445 = vmatprep.subr.mxu0 0.0
        %446 = vmatpush1.msra.mxu0 0.0
        %447 = vmatprep.subr.mxu0 0.0
        %448 = vmatpush1.msra.mxu0 0.0
        %449 = vmatprep.subr.mxu0 0.0
        %450 = vmatpush1.msra.mxu0 0.0
        %451 = vmatprep.subr.mxu0 0.0
        %452 = vmatpush1.msra.mxu0 0.0
        %453 = vmatprep.mubr.f32.mxu0 0.0
        %454 = vmatmul.mubr.f32.gmra.mrb[0].mxu0 %v387
        %v455 = vpop.f32.mrb[0].mxu0
        %v456 = vadd.f32 0.0, %v455
        %v457 = vpop.f32.mrb[0].mxu0
        %458 = vdwg.mxu0
        %v459 = vadd.f32 %v374, %v456
        %v460 = vld [vmem:[%s2] sm:$0xff]
        %462 = vset.pattern.permute.xlu0 0
        %463 = vperm.xlu0 %462, %v460
        %v464 = vpop.permute.xlu0 %463
        %v466 = vadd.f32 %v459, %v464
        %467 = vst [vmem:[%s215] sm:$0xff] %v466
        %s468 = sand.u32 %s111, 1
        %s469 = scalar_lea.sflag [#allocation4], %s468
        %s470 = sand.u32 %s111, 1
        %s471 = smul.addr %s470, 8
        %s472 = scalar_lea.vmem [#allocation7], %s471
        // Predicated region
        $region41: #{tpu_custom_call.1} parent=31 // pred_check
          %p473 = pneg %p121
        $region42: #{tpu_custom_call.1} parent=31 // pred_check_branch
          %475 = sbr.rel (%p473) target = $region44
        $region43: #{tpu_custom_call.1} parent=31 // pred_region
          %s477 = ssub.s32 128, 128
          %478 = vsyncadd %s469, %s477
          %s479 = sadd.s32 %s26, %s25
          %s480 = smul.addr %s479, 128
          %s481 = scalar_lea.hbm %s3, %s480
          %s483 = sshll.u32 %s472, 4
          %s484 = int_to_ptr.vmem [resolvable:$true] %s483
          %486 = dma.vmem_to_hbm [thread:$0]  %s484, 128, %s481, %s469
        $region44: #{tpu_custom_call.1} parent=31 // pred_fallthru
          _
      $region32: #{tpu_custom_call.1} parent=5 // pred_fallthru
        _
      %p487 = scmp.le.s32.totalorder 2, %s16
      // Predicated region
      $region45: #{tpu_custom_call.1} parent=5 // pred_check
        %p488 = pneg %p487
      $region46: #{tpu_custom_call.1} parent=5 // pred_check_branch
        %490 = sbr.rel (%p488) target = $region48
      $region47: #{tpu_custom_call.1} parent=5 // pred_region
        %s491 = ssub.s32 %s16, 2
        // Predicated region
        $region49: #{tpu_custom_call.1} parent=47 // pred_check
          %p492 = pneg %p127
        $region50: #{tpu_custom_call.1} parent=47 // pred_check_branch
          %494 = sbr.rel (%p492) target = $region52
        $region51: #{tpu_custom_call.1} parent=47 // pred_region
          %s495 = sand.u32 %s112, 1
          %s496 = scalar_lea.sflag [#allocation4], %s495
          %s497 = sand.u32 %s112, 1
          %s498 = smul.addr %s497, 8
          %s499 = scalar_lea.vmem [#allocation7], %s498
          %500 = dma.done %s496, 128
        $region52: #{tpu_custom_call.1} parent=47 // pred_fallthru
          _
      $region48: #{tpu_custom_call.1} parent=5 // pred_fallthru
        _
    $region6: #{tpu_custom_call.1} parent=1 // loop_footer
      %s20 = sadd.s32 1, %s16
    $region7: #{tpu_custom_call.1} parent=1 // loop_footer_branch
      %15 = sbr.rel target = $region3
    $region8: #{tpu_custom_call.1} parent=1 // loop_exit
      _
    %501 = vsyncpa [#allocation3], 1
    %s502 = scalar_lea.sflag [#allocation3], 1
    %503 = vsyncpa %s502, 1
    %504 = vsyncpa [#allocation6], 1
    %505 = vsyncpa [#allocation4], 1
    %s506 = scalar_lea.sflag [#allocation4], 1
    %507 = vsyncpa %s506, 1

</llo_original>
